<compile_context>
chip_gen: v7x
topology: tpu7x:2x2x1
jax: 0.10.0
libtpu: 0.0.40
codegen_flags: <defaults>
</compile_context>

<pallas_src>
import math

import jax
import jax.numpy as jnp
from jax.experimental import pallas as pl
from jax.experimental.pallas import tpu as pltpu

# ----------------------------- model dims ------------------------------------
S = 8          # sequence length
B = 2          # batch
D_MODEL = 32   # d_model
MAX_LEN = 64   # max_len of the positional-encoding buffer

LANES = 128    # TPU vreg lane width
ROW_TILE = 1024  # rows per grid step for large inputs (v6e: >=512 rows ≈ 85% of HBM roofline)


# --------------------- pe buffer (register_buffer analogue) -------------------
def make_positional_encoding_buffer(d_model: int, max_len: int) -> jax.Array:
    """Builds pe with shape (max_len, 1, d_model), matching the PyTorch module."""
    position = jnp.arange(max_len, dtype=jnp.float32)[:, None]            # (L, 1)
    div_term = jnp.exp(
        jnp.arange(0, d_model, 2, dtype=jnp.float32) * (-math.log(10000.0) / d_model)
    )                                                                     # (D/2,)
    pe = jnp.zeros((max_len, d_model), jnp.float32)
    pe = pe.at[:, 0::2].set(jnp.sin(position * div_term))
    pe = pe.at[:, 1::2].set(jnp.cos(position * div_term))
    # unsqueeze(0).transpose(0, 1)  ->  (max_len, 1, d_model)
    return pe[:, None, :]


def make_pe_slab(pe: jax.Array, batch: int) -> jax.Array:
    """Pre-broadcast pe over the batch axis once: (max_len, batch, d_model).

    pe is static, so this one-time broadcast costs nothing per call and lets
    the per-call add be a same-shape, lane-dense kernel.
    """
    max_len, _, d = pe.shape
    return jnp.broadcast_to(pe, (max_len, batch, d))


# --------------------------------- kernel -------------------------------------
def pe_add_kernel(x_ref, pe_ref, o_ref):
    # Pure same-shape elementwise add (lane-dense tiles).
    o_ref[...] = x_ref[...] + pe_ref[...]


# -------------------------------- wrapper -------------------------------------
def positional_encoding(x: jax.Array, pe_slab: jax.Array) -> jax.Array:
    """x: (S, B, D) f32; pe_slab: (MAX_LEN, B, D) f32 (pre-broadcast buffer)."""
    s, b, d = x.shape
    n = s * b * d
    itemsize = jnp.dtype(x.dtype).itemsize

    cost = pl.CostEstimate(
        flops=n,                          # one add per element
        transcendentals=0,
        bytes_accessed=itemsize * 3 * n,  # x in + pe in + out
    )

    # Contiguous leading-axis slice of the static slab (no relayout).
    pe_slice = pe_slab[:s]

    if n % LANES != 0:
        # Fallback for shapes that do not flatten to full 128-lane rows:
        # same-shape 3-D add (block == full array, so (8,128) rule is satisfied).
        return pl.pallas_call(
            pe_add_kernel,
            out_shape=jax.ShapeDtypeStruct((s, b, d), x.dtype),
            in_specs=[
                pl.BlockSpec((s, b, d), lambda: (0, 0, 0)),
                pl.BlockSpec((s, b, d), lambda: (0, 0, 0)),
            ],
            out_specs=pl.BlockSpec((s, b, d), lambda: (0, 0, 0)),
            input_output_aliases={0: 0},
            cost_estimate=cost,
        )(x, pe_slice)

    rows = n // LANES
    # Row-major flattens are pure bitcasts: both operands collapse identically,
    # so element i of x2 still pairs with element i of pe2.
    x2 = x.reshape(rows, LANES)
    pe2 = pe_slice.reshape(rows, LANES)

    if rows <= ROW_TILE or rows % 8 != 0:
        # Small / latency-bound case: one lane-dense block, no grid machinery.
        out = pl.pallas_call(
            pe_add_kernel,
            out_shape=jax.ShapeDtypeStruct((rows, LANES), x.dtype),
            in_specs=[
                pl.BlockSpec((rows, LANES), lambda: (0, 0)),
                pl.BlockSpec((rows, LANES), lambda: (0, 0)),
            ],
            out_specs=pl.BlockSpec((rows, LANES), lambda: (0, 0)),
            input_output_aliases={0: 0},   # in-place add when caller donates x
            cost_estimate=cost,
        )(x2, pe2)
        return out.reshape(s, b, d)

    # Scaled-up case (e.g. S in the thousands, D >= 512): grid over rows with
    # big lane-dense tiles; "parallel" shards across TensorCores (v7x has 2);
    # explicit VMEM limit sized from the double-buffered footprint so a whole
    # array block never blows v7x's 64 MiB VMEM.
    tile = ROW_TILE
    while rows % tile != 0:   # pick a multiple of 8 that divides rows (rows % 8 == 0 here)
        tile -= 8
    vmem_bytes = 2 * 3 * tile * LANES * itemsize + (4 << 20)   # 2 bufs x 3 arrays + headroom
    out = pl.pallas_call(
        pe_add_kernel,
        out_shape=jax.ShapeDtypeStruct((rows, LANES), x.dtype),
        grid=(rows // tile,),
        in_specs=[
            pl.BlockSpec((tile, LANES), lambda i: (i, 0)),
            pl.BlockSpec((tile, LANES), lambda i: (i, 0)),
        ],
        out_specs=pl.BlockSpec((tile, LANES), lambda i: (i, 0)),
        input_output_aliases={0: 0},
        compiler_params=pltpu.CompilerParams(
            dimension_semantics=("parallel",),
            vmem_limit_bytes=int(vmem_bytes),
        ),
        cost_estimate=cost,
    )(x2, pe2)
    return out.reshape(s, b, d)


# --------------------------- pure-JAX reference --------------------------------
def positional_encoding_ref(x: jax.Array, pe: jax.Array) -> jax.Array:
    return x + pe[: x.shape[0], :]


# ---------------------------------- main ---------------------------------------
if __name__ == "__main__":
    key = jax.random.PRNGKey(0)

    pe = make_positional_encoding_buffer(D_MODEL, MAX_LEN)   # (MAX_LEN, 1, D) like PyTorch
    pe_slab = make_pe_slab(pe, B)                            # (MAX_LEN, B, D), built once

    x = jax.random.normal(key, (S, B, D_MODEL), jnp.float32)

    # Reference computed first (the kernel aliases/donates x's buffer in principle).
    ref = positional_encoding_ref(x, pe)

    out = positional_encoding(x, pe_slab)
    out = jax.block_until_ready(out)

    assert out.shape == (S, B, D_MODEL)
    assert jnp.allclose(out, ref, atol=1e-6, rtol=1e-6), (
        f"max err {jnp.max(jnp.abs(out - ref))}"
    )
    print("KERNEL_OK")
</pallas_src>

<mosaic_0001>
module attributes {stable_mosaic.version = 11 : i64} {
  func.func @pe_add_kernel(%arg0: memref<4x128xf32, #tpu.memory_space<vmem>>, %arg1: memref<4x128xf32, #tpu.memory_space<vmem>>, %arg2: memref<4x128xf32, #tpu.memory_space<vmem>>) attributes {dimension_semantics = [], scalar_prefetch = 0 : i64, scratch_operands = 0 : i64, tpu.core_type = #tpu.core_type<tc>} {
    %c0 = arith.constant 0 : index
    %c0_0 = arith.constant 0 : index
    %0 = vector.load %arg0[%c0, %c0_0] : memref<4x128xf32, #tpu.memory_space<vmem>>, vector<4x128xf32>
    %c0_1 = arith.constant 0 : index
    %c0_2 = arith.constant 0 : index
    %1 = vector.load %arg1[%c0_1, %c0_2] : memref<4x128xf32, #tpu.memory_space<vmem>>, vector<4x128xf32>
    %2 = arith.addf %0, %1 : vector<4x128xf32>
    %c0_3 = arith.constant 0 : index
    %c0_4 = arith.constant 0 : index
    %3 = vector.load %arg2[%c0_3, %c0_4] : memref<4x128xf32, #tpu.memory_space<vmem>>, vector<4x128xf32>
    tpu.vector_store %arg2[%c0_3, %c0_4], %2 {strides = array<i32>} : memref<4x128xf32, #tpu.memory_space<vmem>>, vector<4x128xf32>,
    return
  }
}

</mosaic_0001>

<llo_original>
// kernel: tpu_custom_call.1
$region0: #{tpu_custom_call.1}
  #allocation0 [shape = 'u32[]', space=smem, size = 0x4, offset = 0x4, fixed_abs, tag = 'smem constant byte address 0x4 - core index']
  #allocation1 [shape = 'u32[144,128]{1,0:T(1,128)}', space=vmem, size = 0x12000, scoped, tag = 'internal scratch']
  %s0 = inlined_call_operand.hbm [shape: f32[4,128], index: 0, kind: input, shape index: {}, may-alias: {0,2}]
  %s1 = inlined_call_operand.vmem [shape: f32[4,128], index: 1, kind: input, shape index: {}]
  %s2 = inlined_call_operand.hbm [shape: f32[4,128], index: 2, kind: output, shape index: {}, may-alias: {0,2}]
  %s3 = sld [smem:[#allocation0]]
  $region22: #{tpu_custom_call.1} parent=0
    _
  %s5 = ssub.s32 1, %s3
  %s6 = scalar_select 0, %s5, %s3
  $region1: #{tpu_custom_call.1} parent=0
    #allocation2 [shape = 'u8[2048]{0}', space=vmem, size = 0x800, scoped, tag = 'input window, operand 0, single buffered']
    #allocation3 [shape = 's32[1]{0}', space=sflag, size = 0x4, scoped, tag = 'scoped memory for tpu_custom_call.1']
    #allocation4 [shape = 's32[1]{0}', space=sflag, size = 0x4, scoped, tag = 'scoped memory for tpu_custom_call.1']
    #allocation5 [shape = 'u8[2048]{0}', space=vmem, size = 0x800, scoped, tag = 'output window, operand 0, single buffered']
    %7 = vsyncpa [#allocation3], 0
    %8 = vsyncpa [#allocation4], 0
    // Predicated region
    $region2: #{tpu_custom_call.1} parent=1 // pred_check
      _
    $region3: #{tpu_custom_call.1} parent=1 // pred_check_branch
      %10 = sbr.rel (0) target = $region5
    $region4: #{tpu_custom_call.1} parent=1 // pred_region
      %s12 = ssub.s32 64, 64
      %13 = vsyncadd [#allocation3], %s12
      %s15 = sshll.u32 [#allocation2], 4
      %s16 = int_to_ptr.vmem [resolvable:$true] %s15
      %18 = dma.hbm_to_vmem [thread:$0]  %s0, 64, %s16, [#allocation3]
    $region5: #{tpu_custom_call.1} parent=1 // pred_fallthru
      _
    // Predicated region
    $region6: #{tpu_custom_call.1} parent=1 // pred_check
      _
    $region7: #{tpu_custom_call.1} parent=1 // pred_check_branch
      %20 = sbr.rel (0) target = $region9
    $region8: #{tpu_custom_call.1} parent=1 // pred_region
      _
    $region9: #{tpu_custom_call.1} parent=1 // pred_fallthru
      _
    // Predicated region
    $region10: #{tpu_custom_call.1} parent=1 // pred_check
      _
    $region11: #{tpu_custom_call.1} parent=1 // pred_check_branch
      %22 = sbr.rel (0) target = $region13
    $region12: #{tpu_custom_call.1} parent=1 // pred_region
      %23 = dma.done [#allocation3], 64
    $region13: #{tpu_custom_call.1} parent=1 // pred_fallthru
      _
    %v24 = vld [vmem:[#allocation2] sm:$0xf]
    %v25 = vld [vmem:[%s1] sm:$0xf]
    %v26 = vadd.f32 %v24, %v25
    %27 = vst [vmem:[#allocation5] sm:$0xf] %v26
    // Predicated region
    $region14: #{tpu_custom_call.1} parent=1 // pred_check
      _
    $region15: #{tpu_custom_call.1} parent=1 // pred_check_branch
      %29 = sbr.rel (0) target = $region17
    $region16: #{tpu_custom_call.1} parent=1 // pred_region
      %s31 = ssub.s32 64, 64
      %32 = vsyncadd [#allocation4], %s31
      %s34 = sshll.u32 [#allocation5], 4
      %s35 = int_to_ptr.vmem [resolvable:$true] %s34
      %37 = dma.vmem_to_hbm [thread:$0]  %s35, 64, %s2, [#allocation4]
    $region17: #{tpu_custom_call.1} parent=1 // pred_fallthru
      _
    // Predicated region
    $region18: #{tpu_custom_call.1} parent=1 // pred_check
      _
    $region19: #{tpu_custom_call.1} parent=1 // pred_check_branch
      %39 = sbr.rel (0) target = $region21
    $region20: #{tpu_custom_call.1} parent=1 // pred_region
      %40 = dma.done [#allocation4], 64
    $region21: #{tpu_custom_call.1} parent=1 // pred_fallthru
      _
    %41 = vsyncpa [#allocation3], 1
    %42 = vsyncpa [#allocation4], 1

</llo_original>
